<compile_context>
chip_gen: v7x
topology: tpu7x:2x2x1
jax: 0.10.0
libtpu: 0.0.40
codegen_flags: <defaults>
</compile_context>

<pallas_src>
import functools

import jax
import jax.numpy as jnp
from jax.experimental import pallas as pl
from jax.experimental.pallas import tpu as pltpu


_LANE = 128
_TK_CAP = 2048
_VMEM_TILE_BUDGET = 38 * 1024 * 1024   # tile-sizing budget (leaves headroom on v7x's 64 MiB/TC)
_VMEM_LIMIT_CAP = 50 * 1024 * 1024     # never request close to the full 64 MiB on v7x
_VMEM_LIMIT_FLOOR = 24 * 1024 * 1024   # v5e's default scoped limit is only 16 MiB -> always set


def _round_up(a: int, b: int) -> int:
    return ((a + b - 1) // b) * b


def _largest_divisor_tile(total: int, cap: int, step: int = _LANE) -> int:
    """Largest multiple of `step` that divides `total` (a multiple of step) and is <= cap."""
    units = total // step
    best = 1
    for d in range(1, units + 1):
        if units % d == 0 and d * step <= cap:
            best = d
    return best * step


# ----------------------------------------------------------------------------- kernels


def _conv1d_kernel_f32_out(x_ref, w_ref, b_ref, o_ref):
    # x: (tm, tk), w: (tk, tn), b: (1, tn) f32, o: (tm, tn) f32.
    # Output block index is constant across the k axis, so o_ref is VMEM-resident
    # and doubles as the f32 accumulator (no scratch, no epilogue copy).
    k = pl.program_id(2)
    prod = jnp.dot(x_ref[...], w_ref[...], preferred_element_type=jnp.float32)

    @pl.when(k == 0)
    def _():
        o_ref[...] = prod            # first K step: store (no zero-init + RMW)

    @pl.when(k > 0)
    def _():
        o_ref[...] += prod

    @pl.when(k == pl.num_programs(2) - 1)
    def _():
        o_ref[...] += b_ref[...]     # bias add in f32 at the last K step


def _conv1d_kernel_acc(x_ref, w_ref, b_ref, o_ref, acc_ref):
    # Non-f32 output (e.g. bf16): keep a f32 VMEM accumulator, cast once at the end.
    k = pl.program_id(2)
    prod = jnp.dot(x_ref[...], w_ref[...], preferred_element_type=jnp.float32)

    @pl.when(k == 0)
    def _():
        acc_ref[...] = prod

    @pl.when(k > 0)
    def _():
        acc_ref[...] += prod

    @pl.when(k == pl.num_programs(2) - 1)
    def _():
        o_ref[...] = (acc_ref[...] + b_ref[...]).astype(o_ref.dtype)


# ----------------------------------------------------------------------------- tiling


def _choose_tiles(M, nx, nf, in_bytes, out_bytes, needs_acc):
    nxp = _round_up(nx, _LANE)
    nf128 = _round_up(nf, _LANE)

    # K tile: a divisor of the 128-aligned K -> no K padding beyond lane alignment.
    tk = _largest_divisor_tile(nxp, _TK_CAP)

    # M tile candidates: a single full tile for small M, otherwise a sweep.
    if M <= 1024:
        tm_cands = [_round_up(M, 16)]
    else:
        tm_cands = [1024, 896, 768, 640, 512, 384, 256, 128]
        if M <= 2048:
            tm_cands.append(_round_up(M, 16))   # one pad-free tile option
    tn_cands = [t for t in (1024, 896, 768, 640, 512, 384, 256, 128) if t <= nf128]
    if not tn_cands:
        tn_cands = [nf128]

    best = None
    for tm in tm_cands:
        Mp = _round_up(M, tm)
        for tn in tn_cands:
            nfp = _round_up(nf128, tn)
            vmem = (2 * (tm * tk + tk * tn) * in_bytes      # double-buffered x/w tiles
                    + 2 * tn * 4                            # double-buffered bias tile
                    + 2 * tm * tn * out_bytes               # double-buffered out tile
                    + (tm * tn * 4 if needs_acc else 0))    # f32 accumulator scratch
            if vmem > _VMEM_TILE_BUDGET:
                continue
            gm, gn = Mp // tm, nfp // tn
            # HBM traffic proxy: x block-row streamed gn times, weight block-col gm times.
            traffic = (gn * Mp * nxp * in_bytes
                       + gm * nxp * nfp * in_bytes
                       + Mp * nfp * out_bytes)
            key = (traffic, -(tm * tn))
            if best is None or key < best[0]:
                best = (key, (tm, tn, Mp, nfp, vmem))

    if best is None:
        # Degenerate fallback (huge K tile) — shrink everything to minimum tiles.
        tm, tn, tk = 128 if M > 128 else _round_up(M, 16), tn_cands[-1], _LANE
        Mp, nfp = _round_up(M, tm), _round_up(nf128, tn)
        vmem = (2 * (tm * tk + tk * tn) * in_bytes + 2 * tn * 4
                + 2 * tm * tn * out_bytes + (tm * tn * 4 if needs_acc else 0))
    else:
        tm, tn, Mp, nfp, vmem = best[1]

    # v7x megacore balance: keep small odd parallel tile counts even (halving a tile
    # only shrinks VMEM use, so the estimate above stays a valid upper bound).
    gm, gn = Mp // tm, nfp // tn
    if 1 < gm * gn <= 16 and (gm * gn) % 2 == 1:
        if tn % 256 == 0:
            tn //= 2
        elif tm % 32 == 0 and tm > 16:
            tm //= 2

    return tm, tn, tk, Mp, nfp, nxp, vmem


# ----------------------------------------------------------------------------- wrapper


@functools.partial(jax.jit, static_argnames=("compute_dtype",))
def conv1d_pallas(x, weight, bias, *, compute_dtype=None):
    """y = x @ weight + bias, x: (..., nx), weight: (nx, nf), bias: (nf,)."""
    nx, nf = weight.shape
    assert x.shape[-1] == nx, "x last dim must equal weight first dim"
    lead_shape = x.shape[:-1]
    out_dtype = x.dtype

    if compute_dtype is None:
        # bf16 activations/params stay bf16 (MXU-native path, half the DMA bytes);
        # f32 inputs stay f32 so we exactly match the reference module.
        compute_dtype = jnp.promote_types(x.dtype, weight.dtype)
    compute_dtype = jnp.dtype(compute_dtype)

    x2 = x.reshape(-1, nx).astype(compute_dtype)
    w_c = weight.astype(compute_dtype)
    M = x2.shape[0]

    in_bytes = compute_dtype.itemsize
    out_bytes = jnp.dtype(out_dtype).itemsize
    out_is_f32 = jnp.dtype(out_dtype) == jnp.float32
    needs_acc = not out_is_f32

    tm, tn, tk, Mp, nfp, nxp, est_vmem = _choose_tiles(
        M, nx, nf, in_bytes, out_bytes, needs_acc)

    # Pad only when actually needed. K padding is zeros (contributes nothing);
    # padded M rows / N cols are sliced off after the call.
    # TODO(synk): in a real model, pre-pad/pack `weight` once at parameter init so
    # this per-call jnp.pad HBM round-trip disappears for non-128-aligned widths.
    if Mp != M or nxp != nx:
        x2 = jnp.pad(x2, ((0, Mp - M), (0, nxp - nx)))
    if nxp != nx or nfp != nf:
        w_c = jnp.pad(w_c, ((0, nxp - nx), (0, nfp - nf)))
    b_p = bias.astype(jnp.float32)
    if nfp != nf:
        b_p = jnp.pad(b_p, (0, nfp - nf))
    b_p = b_p.reshape(1, nfp)

    grid = (Mp // tm, nfp // tn, nxp // tk)

    # Always set the scoped VMEM limit explicitly (v5e default is only 16 MiB),
    # and never request near the full 64 MiB of a v7x TensorCore.
    vmem_limit = int(min(_VMEM_LIMIT_CAP,
                         max(_VMEM_LIMIT_FLOOR, est_vmem * 5 // 4 + (2 << 20))))

    cost = pl.CostEstimate(
        flops=2 * M * nx * nf,
        transcendentals=0,
        bytes_accessed=(M * nx * in_bytes + nx * nf * in_bytes
                        + nf * 4 + M * nf * out_bytes),
    )

    kernel = _conv1d_kernel_f32_out if out_is_f32 else _conv1d_kernel_acc
    scratch = [] if out_is_f32 else [pltpu.VMEM((tm, tn), jnp.float32)]

    out = pl.pallas_call(
        kernel,
        out_shape=jax.ShapeDtypeStruct((Mp, nfp), out_dtype),
        grid_spec=pltpu.PrefetchScalarGridSpec(
            num_scalar_prefetch=0,
            grid=grid,
            in_specs=[
                pl.BlockSpec((tm, tk), lambda i, j, k: (i, k)),   # x tile
                pl.BlockSpec((tk, tn), lambda i, j, k: (k, j)),   # weight tile
                pl.BlockSpec((1, tn), lambda i, j, k: (0, j)),    # bias tile
            ],
            out_specs=pl.BlockSpec((tm, tn), lambda i, j, k: (i, j)),
            scratch_shapes=scratch,
        ),
        compiler_params=pltpu.CompilerParams(
            dimension_semantics=("parallel", "parallel", "arbitrary"),
            vmem_limit_bytes=vmem_limit,
        ),
        cost_estimate=cost,
    )(x2, w_c, b_p)

    return out[:M, :nf].reshape(*lead_shape, nf)


if __name__ == "__main__":
    # Module params: Conv1D_(nf, nx) -> weight (nx, nf) ~ N(0, 0.02), bias zeros(nf)
    B, T, nx, nf = 2, 8, 32, 64

    key = jax.random.PRNGKey(0)
    k_x, k_w = jax.random.split(key)

    x = jax.random.normal(k_x, (B, T, nx), dtype=jnp.float32)
    weight = 0.02 * jax.random.normal(k_w, (nx, nf), dtype=jnp.float32)
    bias = jnp.zeros((nf,), dtype=jnp.float32)

    y_ref = (x.reshape(-1, nx) @ weight + bias).reshape(B, T, nf)

    # f32 path (matches module numerics; accumulates directly in o_ref, no scratch).
    y = jax.block_until_ready(conv1d_pallas(x, weight, bias))
    assert y.shape == (B, T, nf)
    assert y.dtype == jnp.float32
    assert jnp.allclose(y, y_ref, atol=1e-5, rtol=1e-5)

    # Explicit bf16 compute path (MXU-native, f32 accumulation, f32 output).
    y_bf = jax.block_until_ready(
        conv1d_pallas(x, weight, bias, compute_dtype=jnp.bfloat16)
    )
    assert jnp.allclose(y_bf, y_ref, atol=2e-2, rtol=2e-2)

    # Fully bf16 inputs stay bf16 (default path keeps input dtype; scratch-acc kernel).
    xb = x.astype(jnp.bfloat16)
    wb = weight.astype(jnp.bfloat16)
    bb = bias.astype(jnp.bfloat16)
    y_b16 = jax.block_until_ready(conv1d_pallas(xb, wb, bb))
    assert y_b16.dtype == jnp.bfloat16
    assert jnp.allclose(y_b16.astype(jnp.float32), y_ref, atol=2e-2, rtol=2e-2)

    # Non-tile-divisible M path (padding / slicing correctness).
    x_odd = jax.random.normal(key, (3, 5, nx), dtype=jnp.float32)
    y_odd = jax.block_until_ready(conv1d_pallas(x_odd, weight, bias))
    y_odd_ref = (x_odd.reshape(-1, nx) @ weight + bias).reshape(3, 5, nf)
    assert jnp.allclose(y_odd, y_odd_ref, atol=1e-5, rtol=1e-5)

    print("KERNEL_OK")
</pallas_src>

<mosaic_0001>
module attributes {stable_mosaic.version = 11 : i64} {
  func.func @_conv1d_kernel_f32_out(%arg0: i32, %arg1: i32, %arg2: i32, %arg3: memref<16x128xf32, #tpu.memory_space<vmem>>, %arg4: memref<128x128xf32, #tpu.memory_space<vmem>>, %arg5: memref<1x128xf32, #tpu.memory_space<vmem>>, %arg6: memref<16x128xf32, #tpu.memory_space<vmem>>) attributes {dimension_semantics = [#tpu.dimension_semantics<parallel>, #tpu.dimension_semantics<parallel>, #tpu.dimension_semantics<arbitrary>], iteration_bounds = array<i64: 1, 1, 1>, scalar_prefetch = 0 : i64, scratch_operands = 0 : i64, tpu.core_type = #tpu.core_type<tc>, window_params = [{transform_indices = @transform_0, window_bounds = array<i64: 16, 128>}, {transform_indices = @transform_1, window_bounds = array<i64: 128, 128>}, {transform_indices = @transform_2, window_bounds = array<i64: 1, 128>}, {transform_indices = @transform_3, window_bounds = array<i64: 16, 128>}]} {
    %c0 = arith.constant 0 : index
    %c0_0 = arith.constant 0 : index
    %0 = vector.load %arg3[%c0, %c0_0] : memref<16x128xf32, #tpu.memory_space<vmem>>, vector<16x128xf32>
    %c0_1 = arith.constant 0 : index
    %c0_2 = arith.constant 0 : index
    %1 = vector.load %arg4[%c0_1, %c0_2] : memref<128x128xf32, #tpu.memory_space<vmem>>, vector<128x128xf32>
    %cst = arith.constant dense<0.000000e+00> : vector<16x128xf32>
    %2 = tpu.matmul %0, %1, %cst {dimension_numbers = #tpu.dot_dimension_numbers<[1], [0], [0], [1], [0, 0, 1, 1], [], []>} : vector<16x128xf32>, vector<128x128xf32>, vector<16x128xf32> -> vector<16x128xf32>
    %c0_i32 = arith.constant 0 : i32
    %3 = arith.cmpi eq, %arg2, %c0_i32 : i32
    %4 = arith.extui %3 : i1 to i32
    %c0_i32_3 = arith.constant 0 : i32
    %5 = arith.cmpi ne, %4, %c0_i32_3 : i32
    scf.if %5 {
      %c0_8 = arith.constant 0 : index
      %c0_9 = arith.constant 0 : index
      %12 = vector.load %arg6[%c0_8, %c0_9] : memref<16x128xf32, #tpu.memory_space<vmem>>, vector<16x128xf32>
      tpu.vector_store %arg6[%c0_8, %c0_9], %2 {strides = array<i32>} : memref<16x128xf32, #tpu.memory_space<vmem>>, vector<16x128xf32>,
    } else {
    }
    %c0_i32_4 = arith.constant 0 : i32
    %6 = arith.cmpi sgt, %arg2, %c0_i32_4 : i32
    %7 = arith.extui %6 : i1 to i32
    %c0_i32_5 = arith.constant 0 : i32
    %8 = arith.cmpi ne, %7, %c0_i32_5 : i32
    scf.if %8 {
      %c0_8 = arith.constant 0 : index
      %c0_9 = arith.constant 0 : index
      %12 = vector.load %arg6[%c0_8, %c0_9] : memref<16x128xf32, #tpu.memory_space<vmem>>, vector<16x128xf32>
      %13 = arith.addf %12, %2 : vector<16x128xf32>
      %c0_10 = arith.constant 0 : index
      %c0_11 = arith.constant 0 : index
      %14 = vector.load %arg6[%c0_10, %c0_11] : memref<16x128xf32, #tpu.memory_space<vmem>>, vector<16x128xf32>
      tpu.vector_store %arg6[%c0_10, %c0_11], %13 {strides = array<i32>} : memref<16x128xf32, #tpu.memory_space<vmem>>, vector<16x128xf32>,
    } else {
    }
    %c0_i32_6 = arith.constant 0 : i32
    %9 = arith.cmpi eq, %arg2, %c0_i32_6 : i32
    %10 = arith.extui %9 : i1 to i32
    %c0_i32_7 = arith.constant 0 : i32
    %11 = arith.cmpi ne, %10, %c0_i32_7 : i32
    scf.if %11 {
      %c0_8 = arith.constant 0 : index
      %c0_9 = arith.constant 0 : index
      %12 = vector.load %arg6[%c0_8, %c0_9] : memref<16x128xf32, #tpu.memory_space<vmem>>, vector<16x128xf32>
      %c0_10 = arith.constant 0 : index
      %c0_11 = arith.constant 0 : index
      %13 = vector.load %arg5[%c0_10, %c0_11] : memref<1x128xf32, #tpu.memory_space<vmem>>, vector<1x128xf32>
      %14 = vector.broadcast %13 : vector<1x128xf32> to vector<16x128xf32>
      %15 = arith.addf %12, %14 : vector<16x128xf32>
      %c0_12 = arith.constant 0 : index
      %c0_13 = arith.constant 0 : index
      %16 = vector.load %arg6[%c0_12, %c0_13] : memref<16x128xf32, #tpu.memory_space<vmem>>, vector<16x128xf32>
      tpu.vector_store %arg6[%c0_12, %c0_13], %15 {strides = array<i32>} : memref<16x128xf32, #tpu.memory_space<vmem>>, vector<16x128xf32>,
    } else {
    }
    return
  }
  func.func @transform_0(%arg0: i32, %arg1: i32, %arg2: i32) -> (i32, i32) {
    %c0_i32 = arith.constant 0 : i32
    return %arg0, %arg2 : i32, i32
  }
  func.func @transform_1(%arg0: i32, %arg1: i32, %arg2: i32) -> (i32, i32) {
    %c0_i32 = arith.constant 0 : i32
    return %arg2, %arg1 : i32, i32
  }
  func.func @transform_2(%arg0: i32, %arg1: i32, %arg2: i32) -> (i32, i32) {
    %c0_i32 = arith.constant 0 : i32
    %c0_i32_0 = arith.constant 0 : i32
    return %c0_i32, %arg1 : i32, i32
  }
  func.func @transform_3(%arg0: i32, %arg1: i32, %arg2: i32) -> (i32, i32) {
    %c0_i32 = arith.constant 0 : i32
    return %arg0, %arg1 : i32, i32
  }
}

</mosaic_0001>

<llo_original>
// kernel: conv1d_pallas.1
$region0: #{conv1d_pallas.1}
  #allocation0 [shape = 'u32[]', space=smem, size = 0x4, offset = 0x4, fixed_abs, tag = 'smem constant byte address 0x4 - core index']
  #allocation1 [shape = 'u32[144,128]{1,0:T(1,128)}', space=vmem, size = 0x12000, scoped, tag = 'internal scratch']
  %s0 = inlined_call_operand.vmem [shape: f32[16,128], index: 0, kind: input, shape index: {}]
  %s1 = inlined_call_operand.vmem [shape: f32[128,128], index: 1, kind: input, shape index: {}]
  %s2 = inlined_call_operand.vmem [shape: f32[1,128], index: 2, kind: input, shape index: {}]
  %s3 = inlined_call_operand.vmem [shape: f32[16,128], index: 3, kind: output, shape index: {}]
  %s4 = sld [smem:[#allocation0]]
  $region34: #{conv1d_pallas.1} parent=0
    _
  %s6 = ssub.s32 1, %s4
  %s7 = scalar_select 0, %s6, %s4
  // Predicated region
  $region2: #{conv1d_pallas.1} parent=0 // pred_check
    _
  $region3: #{conv1d_pallas.1} parent=0 // pred_check_branch
    %9 = sbr.rel (0) target = $region5
  $region4: #{conv1d_pallas.1} parent=0 // pred_region
    _
  $region5: #{conv1d_pallas.1} parent=0 // pred_fallthru
    _
  // Predicated region
  $region6: #{conv1d_pallas.1} parent=0 // pred_check
    _
  $region7: #{conv1d_pallas.1} parent=0 // pred_check_branch
    %11 = sbr.rel (0) target = $region9
  $region8: #{conv1d_pallas.1} parent=0 // pred_region
    _
  $region9: #{conv1d_pallas.1} parent=0 // pred_fallthru
    _
  // Predicated region
  $region10: #{conv1d_pallas.1} parent=0 // pred_check
    _
  $region11: #{conv1d_pallas.1} parent=0 // pred_check_branch
    %13 = sbr.rel (0) target = $region13
  $region12: #{conv1d_pallas.1} parent=0 // pred_region
    _
  $region13: #{conv1d_pallas.1} parent=0 // pred_fallthru
    _
  %v14 = vld [vmem:[%s0] sm:$0xff]
  %v15 = vld [vmem:[%s0 + $0x8] sm:$0xff]
  %v16 = vld [vmem:[%s1] sm:$0xff]
  %v17 = vld [vmem:[%s1 + $0x8] sm:$0xff]
  %v18 = vld [vmem:[%s1 + $0x10] sm:$0xff]
  %v19 = vld [vmem:[%s1 + $0x18] sm:$0xff]
  %v20 = vld [vmem:[%s1 + $0x20] sm:$0xff]
  %v21 = vld [vmem:[%s1 + $0x28] sm:$0xff]
  %v22 = vld [vmem:[%s1 + $0x30] sm:$0xff]
  %v23 = vld [vmem:[%s1 + $0x38] sm:$0xff]
  %v24 = vld [vmem:[%s1 + $0x40] sm:$0xff]
  %v25 = vld [vmem:[%s1 + $0x48] sm:$0xff]
  %v26 = vld [vmem:[%s1 + $0x50] sm:$0xff]
  %v27 = vld [vmem:[%s1 + $0x58] sm:$0xff]
  %v28 = vld [vmem:[%s1 + $0x60] sm:$0xff]
  %v29 = vld [vmem:[%s1 + $0x68] sm:$0xff]
  %v30 = vld [vmem:[%s1 + $0x70] sm:$0xff]
  %v31 = vld [vmem:[%s1 + $0x78] sm:$0xff]
  %32 = vmatprep.subr.mxu0 0.0
  %33 = vmatpush1.msra.mxu0 %v16
  %34 = vmatprep.subr.mxu0 0.0
  %35 = vmatpush1.msra.mxu0 %v17
  %36 = vmatprep.subr.mxu0 0.0
  %37 = vmatpush1.msra.mxu0 %v18
  %38 = vmatprep.subr.mxu0 0.0
  %39 = vmatpush1.msra.mxu0 %v19
  %40 = vmatprep.subr.mxu0 0.0
  %41 = vmatpush1.msra.mxu0 %v20
  %42 = vmatprep.subr.mxu0 0.0
  %43 = vmatpush1.msra.mxu0 %v21
  %44 = vmatprep.subr.mxu0 0.0
  %45 = vmatpush1.msra.mxu0 %v22
  %46 = vmatprep.subr.mxu0 0.0
  %47 = vmatpush1.msra.mxu0 %v23
  %48 = vmatprep.subr.mxu0 0.0
  %49 = vmatpush1.msra.mxu0 %v24
  %50 = vmatprep.subr.mxu0 0.0
  %51 = vmatpush1.msra.mxu0 %v25
  %52 = vmatprep.subr.mxu0 0.0
  %53 = vmatpush1.msra.mxu0 %v26
  %54 = vmatprep.subr.mxu0 0.0
  %55 = vmatpush1.msra.mxu0 %v27
  %56 = vmatprep.subr.mxu0 0.0
  %57 = vmatpush1.msra.mxu0 %v28
  %58 = vmatprep.subr.mxu0 0.0
  %59 = vmatpush1.msra.mxu0 %v29
  %60 = vmatprep.subr.mxu0 0.0
  %61 = vmatpush1.msra.mxu0 %v30
  %62 = vmatprep.subr.mxu0 0.0
  %63 = vmatpush1.msra.mxu0 %v31
  %64 = vmatprep.subr.mxu0 0.0
  %65 = vmatpush1.msra.mxu0 0.0
  %66 = vmatprep.subr.mxu0 0.0
  %67 = vmatpush1.msra.mxu0 0.0
  %68 = vmatprep.subr.mxu0 0.0
  %69 = vmatpush1.msra.mxu0 0.0
  %70 = vmatprep.subr.mxu0 0.0
  %71 = vmatpush1.msra.mxu0 0.0
  %72 = vmatprep.subr.mxu0 0.0
  %73 = vmatpush1.msra.mxu0 0.0
  %74 = vmatprep.subr.mxu0 0.0
  %75 = vmatpush1.msra.mxu0 0.0
  %76 = vmatprep.subr.mxu0 0.0
  %77 = vmatpush1.msra.mxu0 0.0
  %78 = vmatprep.subr.mxu0 0.0
  %79 = vmatpush1.msra.mxu0 0.0
  %80 = vmatprep.subr.mxu0 0.0
  %81 = vmatpush1.msra.mxu0 0.0
  %82 = vmatprep.subr.mxu0 0.0
  %83 = vmatpush1.msra.mxu0 0.0
  %84 = vmatprep.subr.mxu0 0.0
  %85 = vmatpush1.msra.mxu0 0.0
  %86 = vmatprep.subr.mxu0 0.0
  %87 = vmatpush1.msra.mxu0 0.0
  %88 = vmatprep.subr.mxu0 0.0
  %89 = vmatpush1.msra.mxu0 0.0
  %90 = vmatprep.subr.mxu0 0.0
  %91 = vmatpush1.msra.mxu0 0.0
  %92 = vmatprep.subr.mxu0 0.0
  %93 = vmatpush1.msra.mxu0 0.0
  %94 = vmatprep.subr.mxu0 0.0
  %95 = vmatpush1.msra.mxu0 0.0
  %96 = vmatprep.mubr.f32.mxu0 0.0
  %97 = vmatmul.mubr.f32.gmra.mrb[0].mxu0 %v14
  %v98 = vpop.f32.mrb[0].mxu0
  %v99 = vadd.f32 0.0, %v98
  %v100 = vpop.f32.mrb[0].mxu0
  %101 = vmatprep.mubr.f32.mxu0 0.0
  %102 = vmatmul.mubr.f32.gmra.mrb[0].mxu0 %v15
  %v103 = vpop.f32.mrb[0].mxu0
  %v104 = vadd.f32 0.0, %v103
  %v105 = vpop.f32.mrb[0].mxu0
  %106 = vdwg.mxu0
  %p107 = scmp.eq.s32.totalorder 0, 0
  // Predicated region
  $region14: #{conv1d_pallas.1} parent=0 // pred_check
    %p108 = pneg %p107
  $region15: #{conv1d_pallas.1} parent=0 // pred_check_branch
    %110 = sbr.rel (%p108) target = $region17
  $region16: #{conv1d_pallas.1} parent=0 // pred_region
    %111 = vst [vmem:[%s3] sm:$0xff] %v99
    %112 = vst [vmem:[%s3 + $0x8] sm:$0xff] %v104
  $region17: #{conv1d_pallas.1} parent=0 // pred_fallthru
    _
  %p113 = scmp.gt.s32.totalorder 0, 0
  // Predicated region
  $region18: #{conv1d_pallas.1} parent=0 // pred_check
    %p114 = pneg %p113
  $region19: #{conv1d_pallas.1} parent=0 // pred_check_branch
    %116 = sbr.rel (%p114) target = $region21
  $region20: #{conv1d_pallas.1} parent=0 // pred_region
    %v117 = vld [vmem:[%s3] sm:$0xff]
    %v118 = vld [vmem:[%s3 + $0x8] sm:$0xff]
    %v119 = vadd.f32 %v117, %v99
    %v120 = vadd.f32 %v118, %v104
    %121 = vst [vmem:[%s3] sm:$0xff] %v119
    %122 = vst [vmem:[%s3 + $0x8] sm:$0xff] %v120
  $region21: #{conv1d_pallas.1} parent=0 // pred_fallthru
    _
  // Predicated region
  $region22: #{conv1d_pallas.1} parent=0 // pred_check
    %p123 = pneg %p107
  $region23: #{conv1d_pallas.1} parent=0 // pred_check_branch
    %125 = sbr.rel (%p123) target = $region25
  $region24: #{conv1d_pallas.1} parent=0 // pred_region
    %v126 = vld [vmem:[%s3] sm:$0xff]
    %v127 = vld [vmem:[%s3 + $0x8] sm:$0xff]
    %v128 = vld [vmem:[%s2] sm:$0x1]
    %v130 = vlaneseq
    %v131 = vshrl.u32 %v130, 7
    %v132 = vsub.s32 0, %v131
    %v133 = vrot.slane %v128, %v132
    %v135 = vadd.f32 %v126, %v133
    %v136 = vadd.f32 %v127, %v133
    %137 = vst [vmem:[%s3] sm:$0xff] %v135
    %138 = vst [vmem:[%s3 + $0x8] sm:$0xff] %v136
  $region25: #{conv1d_pallas.1} parent=0 // pred_fallthru
    _
  // Predicated region
  $region26: #{conv1d_pallas.1} parent=0 // pred_check
    _
  $region27: #{conv1d_pallas.1} parent=0 // pred_check_branch
    %140 = sbr.rel (0) target = $region29
  $region28: #{conv1d_pallas.1} parent=0 // pred_region
    _
  $region29: #{conv1d_pallas.1} parent=0 // pred_fallthru
    _
  // Predicated region
  $region30: #{conv1d_pallas.1} parent=0 // pred_check
    _
  $region31: #{conv1d_pallas.1} parent=0 // pred_check_branch
    %142 = sbr.rel (0) target = $region33
  $region32: #{conv1d_pallas.1} parent=0 // pred_region
    _
  $region33: #{conv1d_pallas.1} parent=0 // pred_fallthru
    _

</llo_original>
